<compile_context>
chip_gen: v7x
topology: tpu7x:2x2x1
jax: 0.10.0
libtpu: 0.0.40
codegen_flags: <defaults>
</compile_context>

<pallas_src>
import jax
import jax.numpy as jnp
from jax.experimental import pallas as pl
from jax.experimental.pallas import tpu as pltpu

_LANE = 128


def ff_kernel_fullrow(x_ref, w1_ref, b1_ref, w2_ref, b2_ref, o_ref):
    """Grid: (batch tiles,).  Full input row per block -> no reduction axis,
    one contiguous HBM read per row, no accumulator round-trip."""
    x = x_ref[...].astype(jnp.float32)
    w1 = w1_ref[...].astype(jnp.float32)
    # Hidden Linear(I, 1): a width-1 matmul degenerates to a per-row dot
    # product, so keep it on the VPU (elementwise mul) + one XLU lane
    # reduction instead of a 1-column MXU matmul.
    dot = jnp.sum(x * w1, axis=-1, keepdims=True)                  # (tb, 1) f32
    h = jnp.tanh(dot + b1_ref[0, 0])                               # EUP
    # Output Linear(1, O) is an outer product -> broadcast multiply-add.
    y = h * w2_ref[...].astype(jnp.float32) + b2_ref[...].astype(jnp.float32)
    # O << 128 lanes => lane-masked stores.  Read traffic (I per row) normally
    # dominates; a lane-dense repack (flatten to B*O / pad O to 128) needs an
    # in-kernel relayout or 8x write traffic, so keep the natural [B, O] slab.
    o_ref[...] = y.astype(o_ref.dtype)


def ff_kernel_tiled(x_ref, w1_ref, b1_ref, w2_ref, b2_ref, o_ref, acc_ref):
    """Grid: (batch tiles ["parallel"], feature tiles ["arbitrary" reduction]).
    acc_ref is a lane-wide (tb, 128) f32 accumulator: each feature step does
    only VPU adds over the 128-lane vreg columns; the single cross-lane XLU
    reduction + tanh happens once per batch tile in the finalize phase."""
    k = pl.program_id(1)

    @pl.when(k == 0)
    def _init():
        acc_ref[...] = jnp.zeros_like(acc_ref)

    x = x_ref[...].astype(jnp.float32)
    w1 = w1_ref[...].astype(jnp.float32)
    prod = x * w1                                                  # (tb, ti)
    ti = x_ref.shape[-1]                                           # static, 128-multiple
    partial = prod[:, 0:_LANE]
    for c in range(1, ti // _LANE):                                # unrolled VPU adds
        partial = partial + prod[:, c * _LANE:(c + 1) * _LANE]
    acc_ref[...] += partial

    @pl.when(k == pl.num_programs(1) - 1)
    def _finalize():
        dot = jnp.sum(acc_ref[...], axis=-1, keepdims=True)        # one XLU reduce
        h = jnp.tanh(dot + b1_ref[0, 0])
        y = h * w2_ref[...].astype(jnp.float32) + b2_ref[...].astype(jnp.float32)
        o_ref[...] = y.astype(o_ref.dtype)


def _choose_tiles(batch, in_features, out_features, itemsize, vmem_budget_bytes):
    """Pick (tb, ti).  Prefer ti == I (no reduction grid axis); only tile the
    feature axis if full rows would push the batch tile below ~256 rows."""
    padded_out = max(_LANE, -(-out_features // _LANE) * _LANE)

    def tb_for(ti):
        # Double-buffered x block + double-buffered lane-padded out block +
        # lane-wide f32 accumulator scratch (counted conservatively even for
        # the full-row variant that does not allocate it).
        bytes_per_row = 2 * ti * itemsize + 2 * padded_out * itemsize + _LANE * 4
        tb = int(vmem_budget_bytes // bytes_per_row)
        tb = min(tb, 4096)
        return max((tb // 8) * 8, 8)

    ti = in_features
    tb = tb_for(ti)
    if tb < 256 and batch > tb:
        # Full-I rows would make the batch tile too skinny: fall back to
        # feature tiling (candidates are 128-multiples so the in-kernel VPU
        # column reduce stays lane-aligned).
        for cand in (1024, 512, 256, 128):
            if cand < in_features and in_features % cand == 0:
                ti = cand
                tb = tb_for(ti)
                break
    if batch <= tb:
        tb = batch  # single full-batch block (full-dim block is always legal)
    return tb, ti


def _vmem_config():
    """Generation-gated VMEM budget / scoped limit.
    v7x has only 64 MiB physical VMEM per TC (vs 128 MiB on v5e/v6e)."""
    try:
        kind = jax.devices()[0].device_kind.lower()
    except Exception:  # pragma: no cover - defensive
        kind = ""
    if "v7" in kind:
        return 16 * 1024 * 1024, 40 * 1024 * 1024, True
    return 28 * 1024 * 1024, 64 * 1024 * 1024, False


def _build_call(shape_x, dtype_x, out_features, tb, ti, batch_sem, vmem_limit):
    B, I = shape_x
    O = out_features
    if ti >= I:
        grid = (pl.cdiv(B, tb),)
        in_specs = [
            pl.BlockSpec((tb, I), lambda b: (b, 0)),            # x: batch tiled
            pl.BlockSpec((1, I), lambda b: (0, 0)),             # w1: resident
            pl.BlockSpec(memory_space=pltpu.MemorySpace.SMEM),  # b1: SMEM scalar
            pl.BlockSpec((1, O), lambda b: (0, 0)),             # w2: resident
            pl.BlockSpec((1, O), lambda b: (0, 0)),             # b2: resident
        ]
        out_specs = pl.BlockSpec((tb, O), lambda b: (b, 0))
        scratch = []
        kernel = ff_kernel_fullrow
        dims = (batch_sem,)
    else:
        grid = (pl.cdiv(B, tb), I // ti)
        in_specs = [
            pl.BlockSpec((tb, ti), lambda b, k: (b, k)),        # x: batch/feature tiled
            pl.BlockSpec((1, ti), lambda b, k: (0, k)),         # w1: feature tiled
            pl.BlockSpec(memory_space=pltpu.MemorySpace.SMEM),  # b1: SMEM scalar
            pl.BlockSpec((1, O), lambda b, k: (0, 0)),          # w2: resident
            pl.BlockSpec((1, O), lambda b, k: (0, 0)),          # b2: resident
        ]
        out_specs = pl.BlockSpec((tb, O), lambda b, k: (b, 0))
        scratch = [pltpu.VMEM((tb, _LANE), jnp.float32)]        # lane-wide accumulator
        kernel = ff_kernel_tiled
        dims = (batch_sem, pltpu.ARBITRARY)

    grid_spec = pltpu.PrefetchScalarGridSpec(
        num_scalar_prefetch=0,
        grid=grid,
        in_specs=in_specs,
        out_specs=out_specs,
        scratch_shapes=scratch,
    )
    return pl.pallas_call(
        kernel,
        out_shape=jax.ShapeDtypeStruct((B, O), dtype_x),
        grid_spec=grid_spec,
        compiler_params=pltpu.CompilerParams(
            dimension_semantics=dims,
            vmem_limit_bytes=vmem_limit,
        ),
    )


def feedforward(x, w1, b1, w2, b2):
    B, I = x.shape
    O = w2.shape[1]
    budget, vmem_limit, is_v7 = _vmem_config()
    tb, ti = _choose_tiles(B, I, O, jnp.dtype(x.dtype).itemsize, budget)
    args = (x, w1, b1, w2, b2)

    if is_v7 and hasattr(pltpu, "CORE_PARALLEL"):
        # v7x: plain "parallel" barely changes codegen; CORE_PARALLEL actually
        # shards the batch axis across the 2 TensorCores (this kernel is
        # HBM-bound, so one idle TC would halve effective bandwidth).
        try:
            return _build_call((B, I), x.dtype, O, tb, ti,
                               pltpu.CORE_PARALLEL, vmem_limit)(*args)
        except Exception:
            pass  # fall back to regular parallel semantics below
    return _build_call((B, I), x.dtype, O, tb, ti,
                       pltpu.PARALLEL, vmem_limit)(*args)


def feedforward_ref(x, w1, b1, w2, b2):
    h = jnp.tanh(x @ w1.T + b1)      # [B, 1]
    return h @ w2 + b2               # [B, O]


if __name__ == "__main__":
    batch, input_size, output_size = 8, 32, 16

    key = jax.random.PRNGKey(0)
    kx, kw1, kb1, kw2, kb2 = jax.random.split(key, 5)

    x = jax.random.normal(kx, (batch, input_size), dtype=jnp.float32)

    # Deterministic init mimicking nn.Linear's U(-1/sqrt(fan_in), 1/sqrt(fan_in)).
    lim1 = 1.0 / jnp.sqrt(jnp.float32(input_size))
    w1 = jax.random.uniform(kw1, (1, input_size), jnp.float32, -lim1, lim1)
    b1 = jax.random.uniform(kb1, (1, 1), jnp.float32, -lim1, lim1)

    lim2 = 1.0  # fan_in of the second layer is 1 (hidden width is 1)
    w2 = jax.random.uniform(kw2, (1, output_size), jnp.float32, -lim2, lim2)
    b2 = jax.random.uniform(kb2, (1, output_size), jnp.float32, -lim2, lim2)

    out = jax.block_until_ready(feedforward(x, w1, b1, w2, b2))

    ref = feedforward_ref(x, w1, b1, w2, b2)
    assert out.shape == (batch, output_size)
    assert jnp.allclose(out, ref, atol=1e-5, rtol=1e-5)

    print("KERNEL_OK")
</pallas_src>

<mosaic_0001>
module attributes {stable_mosaic.version = 11 : i64} {
  func.func @ff_kernel_fullrow(%arg0: i32, %arg1: memref<8x32xf32, #tpu.memory_space<vmem>>, %arg2: memref<1x32xf32, #tpu.memory_space<vmem>>, %arg3: memref<1x1xf32, #tpu.memory_space<smem>>, %arg4: memref<1x16xf32, #tpu.memory_space<vmem>>, %arg5: memref<1x16xf32, #tpu.memory_space<vmem>>, %arg6: memref<8x16xf32, #tpu.memory_space<vmem>>) attributes {dimension_semantics = [#tpu.dimension_semantics<parallel>], iteration_bounds = array<i64: 1>, scalar_prefetch = 0 : i64, scratch_operands = 0 : i64, tpu.core_type = #tpu.core_type<tc>, window_params = [{transform_indices = @transform_0, window_bounds = array<i64: 8, 32>}, {pipeline_mode = #tpu.pipeline_mode<synchronous>, transform_indices = @transform_1, window_bounds = array<i64: 1, 32>}, {transform_indices = @transform_2, window_bounds = array<i64: 1, 1>}, {pipeline_mode = #tpu.pipeline_mode<synchronous>, transform_indices = @transform_3, window_bounds = array<i64: 1, 16>}, {pipeline_mode = #tpu.pipeline_mode<synchronous>, transform_indices = @transform_4, window_bounds = array<i64: 1, 16>}, {transform_indices = @transform_5, window_bounds = array<i64: 8, 16>}]} {
    %c0 = arith.constant 0 : index
    %c0_0 = arith.constant 0 : index
    %0 = vector.load %arg1[%c0, %c0_0] : memref<8x32xf32, #tpu.memory_space<vmem>>, vector<8x32xf32>
    %c0_1 = arith.constant 0 : index
    %c0_2 = arith.constant 0 : index
    %1 = vector.load %arg2[%c0_1, %c0_2] : memref<1x32xf32, #tpu.memory_space<vmem>>, vector<1x32xf32>
    %2 = vector.broadcast %1 : vector<1x32xf32> to vector<8x32xf32>
    %3 = arith.mulf %0, %2 : vector<8x32xf32>
    %cst = arith.constant dense<0.000000e+00> : vector<8xf32>
    %4 = vector.multi_reduction <add>, %3, %cst [1] : vector<8x32xf32> to vector<8xf32>
    %5 = vector.shape_cast %4 : vector<8xf32> to vector<8x1xf32>
    %c0_3 = arith.constant 0 : index
    %c0_4 = arith.constant 0 : index
    %6 = memref.load %arg3[%c0_3, %c0_4] : memref<1x1xf32, #tpu.memory_space<smem>>
    %7 = vector.broadcast %6 : f32 to vector<8x1xf32>
    %8 = arith.addf %5, %7 : vector<8x1xf32>
    %9 = math.tanh %8 : vector<8x1xf32>
    %c0_5 = arith.constant 0 : index
    %c0_6 = arith.constant 0 : index
    %10 = vector.load %arg4[%c0_5, %c0_6] : memref<1x16xf32, #tpu.memory_space<vmem>>, vector<1x16xf32>
    %11 = vector.broadcast %9 : vector<8x1xf32> to vector<8x16xf32>
    %12 = vector.broadcast %10 : vector<1x16xf32> to vector<8x16xf32>
    %13 = arith.mulf %11, %12 : vector<8x16xf32>
    %c0_7 = arith.constant 0 : index
    %c0_8 = arith.constant 0 : index
    %14 = vector.load %arg5[%c0_7, %c0_8] : memref<1x16xf32, #tpu.memory_space<vmem>>, vector<1x16xf32>
    %15 = vector.broadcast %14 : vector<1x16xf32> to vector<8x16xf32>
    %16 = arith.addf %13, %15 : vector<8x16xf32>
    %c0_9 = arith.constant 0 : index
    %c0_10 = arith.constant 0 : index
    %17 = vector.load %arg6[%c0_9, %c0_10] : memref<8x16xf32, #tpu.memory_space<vmem>>, vector<8x16xf32>
    tpu.vector_store %arg6[%c0_9, %c0_10], %16 {strides = array<i32>} : memref<8x16xf32, #tpu.memory_space<vmem>>, vector<8x16xf32>,
    return
  }
  func.func @transform_0(%arg0: i32) -> (i32, i32) {
    %c0_i32 = arith.constant 0 : i32
    %c0_i32_0 = arith.constant 0 : i32
    return %arg0, %c0_i32 : i32, i32
  }
  func.func @transform_1(%arg0: i32) -> (i32, i32) {
    %c0_i32 = arith.constant 0 : i32
    %c0_i32_0 = arith.constant 0 : i32
    %c0_i32_1 = arith.constant 0 : i32
    return %c0_i32, %c0_i32_0 : i32, i32
  }
  func.func @transform_2(%arg0: i32) -> (i32, i32) {
    %c0_i32 = arith.constant 0 : i32
    %c0_i32_0 = arith.constant 0 : i32
    %c0_i32_1 = arith.constant 0 : i32
    return %c0_i32, %c0_i32_0 : i32, i32
  }
  func.func @transform_3(%arg0: i32) -> (i32, i32) {
    %c0_i32 = arith.constant 0 : i32
    %c0_i32_0 = arith.constant 0 : i32
    %c0_i32_1 = arith.constant 0 : i32
    return %c0_i32, %c0_i32_0 : i32, i32
  }
  func.func @transform_4(%arg0: i32) -> (i32, i32) {
    %c0_i32 = arith.constant 0 : i32
    %c0_i32_0 = arith.constant 0 : i32
    %c0_i32_1 = arith.constant 0 : i32
    return %c0_i32, %c0_i32_0 : i32, i32
  }
  func.func @transform_5(%arg0: i32) -> (i32, i32) {
    %c0_i32 = arith.constant 0 : i32
    %c0_i32_0 = arith.constant 0 : i32
    return %arg0, %c0_i32 : i32, i32
  }
}

</mosaic_0001>

<llo_original>
// kernel: tpu_custom_call.1
$region0: #{tpu_custom_call.1}
  #allocation0 [shape = 'u32[]', space=smem, size = 0x4, offset = 0x4, fixed_abs, tag = 'smem constant byte address 0x4 - core index']
  #allocation1 [shape = 'u32[144,128]{1,0:T(1,128)}', space=vmem, size = 0x12000, scoped, tag = 'internal scratch']
  #allocation2 [shape = 'f32[1,1]{1,0:T(1,128)S(6)}', space=smem, size = 0x200, scoped, tag = 'scoped memory for tpu_custom_call.1']
  %s0 = inlined_call_operand.hbm [shape: f32[8,32], index: 0, kind: input, shape index: {}]
  %s1 = inlined_call_operand.hbm [shape: f32[1,32], index: 1, kind: input, shape index: {}]
  %s2 = inlined_call_operand.<no memory space> [shape: f32[1,1], index: 2, kind: input, shape index: {}]
  %s3 = inlined_call_operand.hbm [shape: f32[1,16], index: 3, kind: input, shape index: {}]
  %s4 = inlined_call_operand.hbm [shape: f32[1,16], index: 4, kind: input, shape index: {}]
  %s5 = inlined_call_operand.hbm [shape: f32[8,16], index: 5, kind: output, shape index: {}]
  %s6 = sld [smem:[#allocation0]]
  $region46: #{tpu_custom_call.1} parent=0
    _
  %s8 = ssub.s32 1, %s6
  %s9 = scalar_select 0, %s8, %s6
  %10 = sst [smem:[#allocation2]] %s2
  $region1: #{tpu_custom_call.1} parent=0
    #allocation3 [shape = 'u8[4096]{0}', space=vmem, size = 0x1000, scoped, tag = 'input window, operand 0, single buffered']
    #allocation4 [shape = 's32[1]{0}', space=sflag, size = 0x4, scoped, tag = 'scoped memory for tpu_custom_call.1']
    #allocation5 [shape = 's32[1]{0}', space=sflag, size = 0x4, scoped, tag = 'scoped memory for tpu_custom_call.1']
    #allocation6 [shape = 'u8[512]{0}', space=vmem, size = 0x400, scoped, tag = 'input window, operand 1, single buffered']
    #allocation7 [shape = 's32[1]{0}', space=sflag, size = 0x4, scoped, tag = 'scoped memory for tpu_custom_call.1']
    #allocation8 [shape = 'u8[512]{0}', space=vmem, size = 0x400, scoped, tag = 'input window, operand 3, single buffered']
    #allocation9 [shape = 'u8[512]{0}', space=vmem, size = 0x400, scoped, tag = 'input window, operand 4, single buffered']
    #allocation10 [shape = 's32[1]{0}', space=sflag, size = 0x4, scoped, tag = 'scoped memory for tpu_custom_call.1']
    #allocation11 [shape = 'u8[4096]{0}', space=vmem, size = 0x1000, scoped, tag = 'output window, operand 0, single buffered']
    %11 = vsyncpa [#allocation4], 0
    %12 = vsyncpa [#allocation7], 0
    %13 = vsyncpa [#allocation10], 0
    %14 = vsyncpa [#allocation5], 0
    // Predicated region
    $region2: #{tpu_custom_call.1} parent=1 // pred_check
      _
    $region3: #{tpu_custom_call.1} parent=1 // pred_check_branch
      %16 = sbr.rel (0) target = $region5
    $region4: #{tpu_custom_call.1} parent=1 // pred_region
      %s18 = ssub.s32 128, 128
      %19 = vsyncadd [#allocation4], %s18
      %s21 = sshll.u32 [#allocation3], 4
      %s22 = int_to_ptr.vmem [resolvable:$true] %s21
      %24 = dma.hbm_to_vmem [thread:$0]  %s0, 128, %s22, [#allocation4]
    $region5: #{tpu_custom_call.1} parent=1 // pred_fallthru
      _
    // Predicated region
    $region6: #{tpu_custom_call.1} parent=1 // pred_check
      _
    $region7: #{tpu_custom_call.1} parent=1 // pred_check_branch
      %26 = sbr.rel (0) target = $region9
    $region8: #{tpu_custom_call.1} parent=1 // pred_region
      %s28 = ssub.s32 16, 16
      %29 = vsyncadd [#allocation7], %s28
      %s31 = sshll.u32 [#allocation6], 4
      %s32 = int_to_ptr.vmem [resolvable:$true] %s31
      %34 = dma.hbm_to_vmem [thread:$0]  %s1, 16, %s32, [#allocation7]
    $region9: #{tpu_custom_call.1} parent=1 // pred_fallthru
      _
    // Predicated region
    $region10: #{tpu_custom_call.1} parent=1 // pred_check
      _
    $region11: #{tpu_custom_call.1} parent=1 // pred_check_branch
      %36 = sbr.rel (0) target = $region13
    $region12: #{tpu_custom_call.1} parent=1 // pred_region
      _
    $region13: #{tpu_custom_call.1} parent=1 // pred_fallthru
      _
    // Predicated region
    $region14: #{tpu_custom_call.1} parent=1 // pred_check
      _
    $region15: #{tpu_custom_call.1} parent=1 // pred_check_branch
      %38 = sbr.rel (0) target = $region17
    $region16: #{tpu_custom_call.1} parent=1 // pred_region
      %s40 = ssub.s32 16, 16
      %41 = vsyncadd [#allocation7], %s40
      %s43 = sshll.u32 [#allocation8], 4
      %s44 = int_to_ptr.vmem [resolvable:$true] %s43
      %46 = dma.hbm_to_vmem [thread:$0]  %s3, 16, %s44, [#allocation7]
    $region17: #{tpu_custom_call.1} parent=1 // pred_fallthru
      _
    // Predicated region
    $region18: #{tpu_custom_call.1} parent=1 // pred_check
      _
    $region19: #{tpu_custom_call.1} parent=1 // pred_check_branch
      %48 = sbr.rel (0) target = $region21
    $region20: #{tpu_custom_call.1} parent=1 // pred_region
      %s50 = ssub.s32 16, 16
      %51 = vsyncadd [#allocation10], %s50
      %s53 = sshll.u32 [#allocation9], 4
      %s54 = int_to_ptr.vmem [resolvable:$true] %s53
      %56 = dma.hbm_to_vmem [thread:$0]  %s4, 16, %s54, [#allocation10]
    $region21: #{tpu_custom_call.1} parent=1 // pred_fallthru
      _
    // Predicated region
    $region22: #{tpu_custom_call.1} parent=1 // pred_check
      _
    $region23: #{tpu_custom_call.1} parent=1 // pred_check_branch
      %58 = sbr.rel (0) target = $region25
    $region24: #{tpu_custom_call.1} parent=1 // pred_region
      %59 = dma.done [#allocation4], 128
    $region25: #{tpu_custom_call.1} parent=1 // pred_fallthru
      _
    // Predicated region
    $region26: #{tpu_custom_call.1} parent=1 // pred_check
      _
    $region27: #{tpu_custom_call.1} parent=1 // pred_check_branch
      %61 = sbr.rel (0) target = $region29
    $region28: #{tpu_custom_call.1} parent=1 // pred_region
      %62 = dma.done [#allocation7], 16
    $region29: #{tpu_custom_call.1} parent=1 // pred_fallthru
      _
    // Predicated region
    $region30: #{tpu_custom_call.1} parent=1 // pred_check
      _
    $region31: #{tpu_custom_call.1} parent=1 // pred_check_branch
      %64 = sbr.rel (0) target = $region33
    $region32: #{tpu_custom_call.1} parent=1 // pred_region
      %65 = dma.done [#allocation7], 16
    $region33: #{tpu_custom_call.1} parent=1 // pred_fallthru
      _
    // Predicated region
    $region34: #{tpu_custom_call.1} parent=1 // pred_check
      _
    $region35: #{tpu_custom_call.1} parent=1 // pred_check_branch
      %67 = sbr.rel (0) target = $region37
    $region36: #{tpu_custom_call.1} parent=1 // pred_region
      %68 = dma.done [#allocation10], 16
    $region37: #{tpu_custom_call.1} parent=1 // pred_fallthru
      _
    %v69 = vld [vmem:[#allocation3] sm:$0xff]
    %v70 = vld [vmem:[#allocation6] sm:$0x1]
    %v72 = vlaneseq
    %v73 = vshrl.u32 %v72, 7
    %v74 = vsub.s32 0, %v73
    %v75 = vrot.slane %v70, %v74
    %v77 = vmul.f32 %v69, %v75
    %vm78 = vcmask 261120
    %v79 = vsel %vm78, %v77, 0.0
    %80 = vadd.xlane.f32.xlu0 %v79
    %v81 = vpop.xlane.xlu0 %80
    %s82 = sld [smem:[#allocation2]]
    %v83 = vstv %s82
    %v84 = vadd.f32 %v81, %v83
    %v85 = vtanh.pop %v84
    %v86 = vld [vmem:[#allocation8] sm:$0x1]
    %v88 = vlaneseq
    %v89 = vshrl.u32 %v88, 7
    %v90 = vsub.s32 0, %v89
    %v91 = vrot.slane %v86, %v90
    %v93 = vmul.f32 %v85, %v91
    %v94 = vld [vmem:[#allocation9] sm:$0x1]
    %v96 = vlaneseq
    %v97 = vshrl.u32 %v96, 7
    %v98 = vsub.s32 0, %v97
    %v99 = vrot.slane %v94, %v98
    %v101 = vadd.f32 %v93, %v99
    %vm102 = vcmask 130048
    %103 = vst.msk [vmem:[#allocation11] sm:$0xff] %vm102, %v101
    // Predicated region
    $region38: #{tpu_custom_call.1} parent=1 // pred_check
      _
    $region39: #{tpu_custom_call.1} parent=1 // pred_check_branch
      %105 = sbr.rel (0) target = $region41
    $region40: #{tpu_custom_call.1} parent=1 // pred_region
      %s107 = ssub.s32 128, 128
      %108 = vsyncadd [#allocation5], %s107
      %s110 = sshll.u32 [#allocation11], 4
      %s111 = int_to_ptr.vmem [resolvable:$true] %s110
      %113 = dma.vmem_to_hbm [thread:$0]  %s111, 128, %s5, [#allocation5]
    $region41: #{tpu_custom_call.1} parent=1 // pred_fallthru
      _
    // Predicated region
    $region42: #{tpu_custom_call.1} parent=1 // pred_check
      _
    $region43: #{tpu_custom_call.1} parent=1 // pred_check_branch
      %115 = sbr.rel (0) target = $region45
    $region44: #{tpu_custom_call.1} parent=1 // pred_region
      %116 = dma.done [#allocation5], 128
    $region45: #{tpu_custom_call.1} parent=1 // pred_fallthru
      _
    %117 = vsyncpa [#allocation4], 1
    %118 = vsyncpa [#allocation7], 1
    %119 = vsyncpa [#allocation10], 1
    %120 = vsyncpa [#allocation5], 1

</llo_original>
